<compile_context>
chip_gen: v7x
topology: tpu7x:2x2x1
jax: 0.10.0
libtpu: 0.0.40
codegen_flags: <defaults>
</compile_context>

<pallas_src>
import functools

import jax
import jax.numpy as jnp
import numpy as np
from jax.experimental import pallas as pl
from jax.experimental.pallas import tpu as pltpu

_LANE = 128          # TPU vreg lane width
_MAX_CHUNKS = 128    # cap on unrolled 128-lane chunks per grid step


# ----------------------------------------------------------------------------
# Kernel
# ----------------------------------------------------------------------------
def _acp_kernel(x_ref, o_ref, sum_scr, max_scr, *, n_chunks, has_remainder,
                seq_len, tile_len, last_off):
    """Process one (bb, C, tile_len) tile; accumulate sum/max over L.

    n_chunks > 0 : tile_len == n_chunks * 128.  sum_scr / max_scr are
                   lane-shaped (bb, C, 128) accumulators (f32 / native dtype);
                   each chunk costs one VPU add + one VPU max, and the single
                   cross-lane (XLU) reduce happens only in the epilogue.
    n_chunks == 0: small / non-128-aligned L (single L step); sum_scr /
                   max_scr are (bb, C) and the tile is reduced directly.
    Output block (bb, 3, C) = [mean | max | last], stored once on the final
    L-axis grid step.
    """
    k = pl.program_id(1)

    @pl.when(k == 0)
    def _init():
        sum_scr[...] = jnp.zeros(sum_scr.shape, sum_scr.dtype)
        max_scr[...] = jnp.full(max_scr.shape, -jnp.inf, max_scr.dtype)

    x = x_ref[...]                                   # (bb, C, tile_len), native dtype

    if n_chunks > 0:
        if has_remainder:
            limit = seq_len - k * tile_len           # valid length of this tile
        for j in range(n_chunks):
            sl = x[:, :, j * _LANE:(j + 1) * _LANE]  # (bb, C, 128)
            if has_remainder:
                lane = jax.lax.broadcasted_iota(jnp.int32, sl.shape, 2) + j * _LANE
                valid = lane < limit
                sum_scr[...] += jnp.where(valid, sl, 0).astype(jnp.float32)
                max_scr[...] = jnp.maximum(max_scr[...],
                                           jnp.where(valid, sl, -jnp.inf))
            else:
                sum_scr[...] += sl.astype(jnp.float32)
                max_scr[...] = jnp.maximum(max_scr[...], sl)
    else:
        # Single-step path; the f32 temp is tiny by construction.
        xf = x.astype(jnp.float32)
        sum_scr[...] += jnp.sum(xf, axis=-1)
        max_scr[...] = jnp.maximum(max_scr[...], jnp.max(x, axis=-1))

    @pl.when(k == pl.num_programs(1) - 1)
    def _epilogue():
        if n_chunks > 0:
            s = jnp.sum(sum_scr[...], axis=-1)       # (bb, C): the one XLU reduce
            m = jnp.max(max_scr[...], axis=-1)       # (bb, C), native dtype
        else:
            s = sum_scr[...]
            m = max_scr[...]
        mean = (s / seq_len).astype(o_ref.dtype)     # divide (not mul-by-recip)
        last = x[:, :, last_off]                     # == x[:, :, L-1], native dtype
        o_ref[:, 0:1, :] = mean[:, None, :]
        o_ref[:, 1:2, :] = m[:, None, :].astype(o_ref.dtype)
        o_ref[:, 2:3, :] = last[:, None, :].astype(o_ref.dtype)


# ----------------------------------------------------------------------------
# Tile selection
# ----------------------------------------------------------------------------
def _largest_divisor_at_most(n, cap):
    cap = max(1, min(n, cap))
    for d in range(cap, 0, -1):
        if n % d == 0:
            return d
    return 1


def _pick_tiles(B, C, L, itemsize, budget_bytes):
    """Choose (bb, tl, n_chunks, has_remainder).

    Grows tl before bb (long DMA bursts per (b, c) row), keeping
    2 input buffers + the lane-shaped accumulators inside budget_bytes, and
    keeps >= 2 "parallel" batch grid steps whenever B >= 2 (v7x megacore).
    """
    acc_row = _LANE * 4 + _LANE * itemsize            # f32 sum + native max accumulators

    def row_bytes(tl):                                # per-(b, c)-row footprint
        return 2 * tl * itemsize + acc_row

    # 1) L tile, assuming bb = 1.
    tl_cap = (budget_bytes // max(C, 1) - acc_row) // (2 * itemsize)
    tl_cap = max(_LANE, min(int(tl_cap), _MAX_CHUNKS * _LANE))
    if L <= tl_cap:
        tl, has_remainder = L, False
        n_chunks = L // _LANE if L % _LANE == 0 else 0
    else:
        tl_aligned = (tl_cap // _LANE) * _LANE
        # Prefer a reasonably large exact 128-multiple divisor of L (no masked
        # tail); otherwise take a budget-sized tile and mask the remainder.
        tl_div = 0
        for t in range(tl_aligned, 0, -_LANE):
            if L % t == 0:
                tl_div = t
                break
        if tl_div >= max(_LANE, tl_aligned // 2):
            tl, has_remainder = tl_div, False
        else:
            tl, has_remainder = tl_aligned, (L % tl_aligned != 0)
        n_chunks = tl // _LANE

    # 2) Batch block from the remaining budget; >= 2 parallel steps when B >= 2.
    bb_cap = max(1, budget_bytes // max(1, C * row_bytes(tl)))
    if B >= 2:
        bb_cap = min(bb_cap, B // 2)
    bb = _largest_divisor_at_most(B, bb_cap)
    return bb, tl, n_chunks, has_remainder


# ----------------------------------------------------------------------------
# Wrapper
# ----------------------------------------------------------------------------
def adaptive_concat_pool_rnn(x, *, bidirectional=False):
    """x: (B, C, L) -> (B, 3*C), matching AdaptiveConcatPoolRNN.forward.

    The reference uses channels = x.size(1), so for bidirectional=True the
    slice x[:, channels:, 0] is empty and t3 is x[:, :, -1] for both flags;
    one kernel covers both.
    """
    del bidirectional
    B, C, L = x.shape
    if not jnp.issubdtype(x.dtype, jnp.floating):
        raise TypeError("adaptive_concat_pool_rnn expects a floating dtype")
    itemsize = jnp.dtype(x.dtype).itemsize

    # Generation-aware VMEM budget (v5e/v6e: 128 MiB, v7x: 64 MiB per core).
    try:
        vmem_cap = int(pltpu.get_tpu_info().vmem_capacity_bytes)
    except Exception:  # conservative fallback covers v7x
        vmem_cap = 64 << 20
    budget = min(16 << 20, max(8 << 20, vmem_cap // 8))   # pipelined footprint target
    vmem_limit = int(min(vmem_cap // 2, 64 << 20))        # raise the scoped default

    bb, tl, n_chunks, has_remainder = _pick_tiles(B, C, L, itemsize, budget)
    grid = (B // bb, pl.cdiv(L, tl))

    if n_chunks > 0:
        scratch = [pltpu.VMEM((bb, C, _LANE), jnp.float32),  # lane-shaped running sum
                   pltpu.VMEM((bb, C, _LANE), x.dtype)]      # lane-shaped running max
    else:
        scratch = [pltpu.VMEM((bb, C), jnp.float32),
                   pltpu.VMEM((bb, C), x.dtype)]

    kernel = functools.partial(
        _acp_kernel, n_chunks=n_chunks, has_remainder=has_remainder,
        seq_len=L, tile_len=tl, last_off=(L - 1) % tl)

    out = pl.pallas_call(
        kernel,
        out_shape=jax.ShapeDtypeStruct((B, 3, C), x.dtype),
        grid=grid,
        in_specs=[pl.BlockSpec((bb, C, tl), lambda i, k: (i, 0, k))],
        out_specs=pl.BlockSpec((bb, 3, C), lambda i, k: (i, 0, 0)),
        scratch_shapes=scratch,
        compiler_params=pltpu.CompilerParams(
            dimension_semantics=("parallel", "arbitrary"),
            vmem_limit_bytes=vmem_limit),
    )(x)
    # [mean | max | last] along the size-3 axis == torch.cat(..., dim=1);
    # this reshape copy is ~3/L of the streamed input traffic.
    return out.reshape(B, 3 * C)


# ----------------------------------------------------------------------------
# Pure-JAX reference
# ----------------------------------------------------------------------------
def reference(x):
    t1 = jnp.mean(x, axis=-1)
    t2 = jnp.max(x, axis=-1)
    t3 = x[:, :, -1]
    return jnp.concatenate([t1, t2, t3], axis=1)


# ----------------------------------------------------------------------------
if __name__ == "__main__":
    key = jax.random.PRNGKey(0)
    k1, k2, k3 = jax.random.split(key, 3)

    # Small shape implied by the module: x is (batch, channels, seq_len).
    x = jax.random.normal(k1, (2, 4, 16), jnp.float32)
    out = adaptive_concat_pool_rnn(x)
    jax.block_until_ready(out)
    assert out.shape == (2, 3 * 4)
    np.testing.assert_allclose(np.asarray(out), np.asarray(reference(x)),
                               rtol=1e-5, atol=1e-5)

    # Lane-chunk accumulation path (L a multiple of 128, single L step, bb=2).
    x2 = jax.random.normal(k2, (4, 96, 2048), jnp.float32)
    out2 = adaptive_concat_pool_rnn(x2, bidirectional=True)
    jax.block_until_ready(out2)
    np.testing.assert_allclose(np.asarray(out2), np.asarray(reference(x2)),
                               rtol=1e-5, atol=1e-5)

    # Multi-step L reduction (accumulators carried across grid steps).
    x3 = jax.random.normal(k3, (2, 256, 32768), jnp.float32)
    out3 = adaptive_concat_pool_rnn(x3)
    jax.block_until_ready(out3)
    np.testing.assert_allclose(np.asarray(out3), np.asarray(reference(x3)),
                               rtol=1e-5, atol=1e-5)

    print("KERNEL_OK")
</pallas_src>

<mosaic_0001>
module attributes {stable_mosaic.version = 11 : i64} {
  func.func @_acp_kernel(%arg0: i32, %arg1: i32, %arg2: memref<1x4x16xf32, #tpu.memory_space<vmem>>, %arg3: memref<1x3x4xf32, #tpu.memory_space<vmem>>, %arg4: memref<1x4xf32, #tpu.memory_space<vmem>>, %arg5: memref<1x4xf32, #tpu.memory_space<vmem>>) attributes {dimension_semantics = [#tpu.dimension_semantics<parallel>, #tpu.dimension_semantics<arbitrary>], iteration_bounds = array<i64: 2, 1>, scalar_prefetch = 0 : i64, scratch_operands = 2 : i64, tpu.core_type = #tpu.core_type<tc>, window_params = [{transform_indices = @transform_0, window_bounds = array<i64: 1, 4, 16>}, {transform_indices = @transform_1, window_bounds = array<i64: 1, 3, 4>}]} {
    %c0_i32 = arith.constant 0 : i32
    %0 = arith.cmpi eq, %arg1, %c0_i32 : i32
    %1 = arith.extui %0 : i1 to i32
    %c0_i32_0 = arith.constant 0 : i32
    %2 = arith.cmpi ne, %1, %c0_i32_0 : i32
    scf.if %2 {
      %cst_14 = arith.constant 0.000000e+00 : f32
      %15 = vector.broadcast %cst_14 : f32 to vector<1x4xf32>
      %c0_15 = arith.constant 0 : index
      %c0_16 = arith.constant 0 : index
      %16 = vector.load %arg4[%c0_15, %c0_16] : memref<1x4xf32, #tpu.memory_space<vmem>>, vector<1x4xf32>
      tpu.vector_store %arg4[%c0_15, %c0_16], %15 {strides = array<i32>} : memref<1x4xf32, #tpu.memory_space<vmem>>, vector<1x4xf32>,
      %cst_17 = arith.constant 0xFF800000 : f32
      %17 = vector.broadcast %cst_17 : f32 to vector<1x4xf32>
      %c0_18 = arith.constant 0 : index
      %c0_19 = arith.constant 0 : index
      %18 = vector.load %arg5[%c0_18, %c0_19] : memref<1x4xf32, #tpu.memory_space<vmem>>, vector<1x4xf32>
      tpu.vector_store %arg5[%c0_18, %c0_19], %17 {strides = array<i32>} : memref<1x4xf32, #tpu.memory_space<vmem>>, vector<1x4xf32>,
    } else {
    }
    %c0 = arith.constant 0 : index
    %c0_1 = arith.constant 0 : index
    %c0_2 = arith.constant 0 : index
    %3 = vector.load %arg2[%c0, %c0_1, %c0_2] : memref<1x4x16xf32, #tpu.memory_space<vmem>>, vector<1x4x16xf32>
    %c0_3 = arith.constant 0 : index
    %c0_4 = arith.constant 0 : index
    %4 = vector.load %arg4[%c0_3, %c0_4] : memref<1x4xf32, #tpu.memory_space<vmem>>, vector<1x4xf32>
    %cst = arith.constant dense<0.000000e+00> : vector<1x4xf32>
    %5 = vector.multi_reduction <add>, %3, %cst [2] : vector<1x4x16xf32> to vector<1x4xf32>
    %6 = arith.addf %4, %5 : vector<1x4xf32>
    %c0_5 = arith.constant 0 : index
    %c0_6 = arith.constant 0 : index
    %7 = vector.load %arg4[%c0_5, %c0_6] : memref<1x4xf32, #tpu.memory_space<vmem>>, vector<1x4xf32>
    tpu.vector_store %arg4[%c0_5, %c0_6], %6 {strides = array<i32>} : memref<1x4xf32, #tpu.memory_space<vmem>>, vector<1x4xf32>,
    %c0_7 = arith.constant 0 : index
    %c0_8 = arith.constant 0 : index
    %8 = vector.load %arg5[%c0_7, %c0_8] : memref<1x4xf32, #tpu.memory_space<vmem>>, vector<1x4xf32>
    %cst_9 = arith.constant dense<0xFF800000> : vector<1x4xf32>
    %9 = vector.multi_reduction <maximumf>, %3, %cst_9 [2] : vector<1x4x16xf32> to vector<1x4xf32>
    %10 = arith.maximumf %8, %9 : vector<1x4xf32>
    %c0_10 = arith.constant 0 : index
    %c0_11 = arith.constant 0 : index
    %11 = vector.load %arg5[%c0_10, %c0_11] : memref<1x4xf32, #tpu.memory_space<vmem>>, vector<1x4xf32>
    tpu.vector_store %arg5[%c0_10, %c0_11], %10 {strides = array<i32>} : memref<1x4xf32, #tpu.memory_space<vmem>>, vector<1x4xf32>,
    %c0_i32_12 = arith.constant 0 : i32
    %12 = arith.cmpi eq, %arg1, %c0_i32_12 : i32
    %13 = arith.extui %12 : i1 to i32
    %c0_i32_13 = arith.constant 0 : i32
    %14 = arith.cmpi ne, %13, %c0_i32_13 : i32
    scf.if %14 {
      %c0_14 = arith.constant 0 : index
      %c0_15 = arith.constant 0 : index
      %15 = vector.load %arg4[%c0_14, %c0_15] : memref<1x4xf32, #tpu.memory_space<vmem>>, vector<1x4xf32>
      %c0_16 = arith.constant 0 : index
      %c0_17 = arith.constant 0 : index
      %16 = vector.load %arg5[%c0_16, %c0_17] : memref<1x4xf32, #tpu.memory_space<vmem>>, vector<1x4xf32>
      %cst_18 = arith.constant 1.600000e+01 : f32
      %17 = vector.broadcast %cst_18 : f32 to vector<1x4xf32>
      %18 = arith.divf %15, %17 : vector<1x4xf32>
      %19 = vector.extract_strided_slice %3 {offsets = [0, 0, 15], sizes = [1, 4, 1], strides = [1, 1, 1]} : vector<1x4x16xf32> to vector<1x4x1xf32>
      %20 = vector.shape_cast %19 : vector<1x4x1xf32> to vector<1x4xf32>
      %21 = vector.shape_cast %18 : vector<1x4xf32> to vector<1x1x4xf32>
      %c0_19 = arith.constant 0 : index
      %c0_20 = arith.constant 0 : index
      %c0_21 = arith.constant 0 : index
      %22 = vector.load %arg3[%c0_19, %c0_20, %c0_21] : memref<1x3x4xf32, #tpu.memory_space<vmem>>, vector<1x1x4xf32>
      tpu.vector_store %arg3[%c0_19, %c0_20, %c0_21], %21 {strides = array<i32>} : memref<1x3x4xf32, #tpu.memory_space<vmem>>, vector<1x1x4xf32>,
      %23 = vector.shape_cast %16 : vector<1x4xf32> to vector<1x1x4xf32>
      %c0_22 = arith.constant 0 : index
      %c1 = arith.constant 1 : index
      %c0_23 = arith.constant 0 : index
      %24 = vector.load %arg3[%c0_22, %c1, %c0_23] : memref<1x3x4xf32, #tpu.memory_space<vmem>>, vector<1x1x4xf32>
      tpu.vector_store %arg3[%c0_22, %c1, %c0_23], %23 {strides = array<i32>} : memref<1x3x4xf32, #tpu.memory_space<vmem>>, vector<1x1x4xf32>,
      %25 = vector.shape_cast %20 : vector<1x4xf32> to vector<1x1x4xf32>
      %c0_24 = arith.constant 0 : index
      %c2 = arith.constant 2 : index
      %c0_25 = arith.constant 0 : index
      %26 = vector.load %arg3[%c0_24, %c2, %c0_25] : memref<1x3x4xf32, #tpu.memory_space<vmem>>, vector<1x1x4xf32>
      tpu.vector_store %arg3[%c0_24, %c2, %c0_25], %25 {strides = array<i32>} : memref<1x3x4xf32, #tpu.memory_space<vmem>>, vector<1x1x4xf32>,
    } else {
    }
    return
  }
  func.func @transform_0(%arg0: i32, %arg1: i32) -> (i32, i32, i32) {
    %c0_i32 = arith.constant 0 : i32
    %c0_i32_0 = arith.constant 0 : i32
    return %arg0, %c0_i32, %arg1 : i32, i32, i32
  }
  func.func @transform_1(%arg0: i32, %arg1: i32) -> (i32, i32, i32) {
    %c0_i32 = arith.constant 0 : i32
    %c0_i32_0 = arith.constant 0 : i32
    %c0_i32_1 = arith.constant 0 : i32
    return %arg0, %c0_i32, %c0_i32_0 : i32, i32, i32
  }
}

</mosaic_0001>

<llo_original>
// kernel: tpu_custom_call.1
$region0: #{tpu_custom_call.1}
  #allocation0 [shape = 'u32[]', space=smem, size = 0x4, offset = 0x4, fixed_abs, tag = 'smem constant byte address 0x4 - core index']
  #allocation1 [shape = 'u32[144,128]{1,0:T(1,128)}', space=vmem, size = 0x12000, scoped, tag = 'internal scratch']
  #allocation2 [shape = 'f32[1,4]{1,0:T(1,128)}', space=vmem, size = 0x200, scoped, tag = 'scratch operand']
  #allocation3 [shape = 'f32[1,4]{1,0:T(1,128)}', space=vmem, size = 0x200, scoped, tag = 'scratch operand']
  %s0 = inlined_call_operand.hbm [shape: f32[2,4,16], index: 0, kind: input, shape index: {}]
  %s1 = inlined_call_operand.vmem [shape: f32[2,3,4], index: 1, kind: output, shape index: {}]
  %s2 = sld [smem:[#allocation0]]
  $region49: #{tpu_custom_call.1} parent=0
    _
  %s4 = ssub.s32 1, %s2
  %s5 = scalar_select 0, %s4, %s2
  $region1: #{tpu_custom_call.1} parent=0
    #allocation4 [shape = 'u8[4096]{0}', space=vmem, size = 0x1000, scoped, tag = 'input window, operand 0']
    #allocation5 [shape = 's32[2]{0}', space=sflag, size = 0x8, scoped, tag = 'scoped memory for tpu_custom_call.1']
    %6 = vsyncpa [#allocation5], 0
    %s7 = scalar_lea.sflag [#allocation5], 1
    %8 = vsyncpa %s7, 0
    loop: start=0, step=1, limit=4
    $region2: #{tpu_custom_call.1} parent=1 // loop_pre_header
      _
    $region3: #{tpu_custom_call.1} parent=1 // loop_header
      %s10 = sphi 0, %s14
      %p11 = scmp.ge.s32.totalorder %s10, 4
      %s17 = sphi 0, %s29
      %s18 = sphi 0, %s25
      %s19 = sphi 0, %s17
      %s20 = sphi 0, %s18
      %s21 = sphi 0, %s19
      %s22 = sphi 0, %s20
      %s34 = sphi 0, %s36
      %s37 = sphi 0, %s34
      %s38 = sphi 0, %s37
      %s54 = sphi 0, %s38
      %s60 = sphi 0, %s62
      %s63 = sphi 0, %s60
      %s64 = sphi 0, %s63
      %s80 = sphi 0, %s64
    $region4: #{tpu_custom_call.1} parent=1 // loop_header_branch
      %13 = sbr.rel (%p11) target = $region8
    $region5: #{tpu_custom_call.1} parent=1 // loop_body
      %s15 = ssub.s32 %s10, 1
      %s16 = ssub.s32 %s10, 2
      %s23 = sadd.s32 1, %s18
      %p24 = scmp.ge.s32.totalorder %s23, 1
      %s25 = scalar_select %p24, 0, %s23
      %s26 = sadd.s32 1, %s17
      %s27 = scalar_select %p24, %s26, %s17
      %p28 = scmp.ge.s32.totalorder %s27, 2
      %s29 = scalar_select %p28, 0, %s27
      %s30 = ssub.s32 %s17, %s29
      %s31 = ssub.s32 %s18, %s25
      %s32 = sor.u32 %s30, %s31
      %p33 = scmp.eq.s32.totalorder %s32, 0
      %s35 = sadd.s32 %s34, 1
      %s36 = scalar_select %p33, %s34, %s35
      %p39 = pneg %p33
      %p40 = scmp.eq.s32.totalorder %s10, 1
      %p41 = por %p39, %p40
      %p42 = scmp.ne.s32.totalorder %s34, %s37
      %p43 = scmp.eq.s32.totalorder %s10, 0
      %p44 = por %p42, %p43
      %p45 = scmp.ne.s32.totalorder %s34, %s37
      %p46 = scmp.eq.s32.totalorder %s15, 1
      %p47 = por %p45, %p46
      %p48 = scmp.ne.s32.totalorder %s37, %s38
      %p49 = scmp.eq.s32.totalorder %s15, 0
      %p50 = por %p48, %p49
      %p51 = scmp.ne.s32.totalorder %s37, %s38
      %p52 = scmp.eq.s32.totalorder %s16, 1
      %p53 = por %p51, %p52
      %p55 = scmp.ne.s32.totalorder %s38, %s54
      %p56 = scmp.eq.s32.totalorder %s16, 0
      %p57 = por %p55, %p56
      %s58 = ssub.s32 %s17, %s29
      %p59 = scmp.eq.s32.totalorder %s58, 0
      %s61 = sadd.s32 %s60, 1
      %s62 = scalar_select %p59, %s60, %s61
      %p65 = pneg %p59
      %p66 = scmp.eq.s32.totalorder %s10, 1
      %p67 = por %p65, %p66
      %p68 = scmp.ne.s32.totalorder %s60, %s63
      %p69 = scmp.eq.s32.totalorder %s10, 0
      %p70 = por %p68, %p69
      %p71 = scmp.ne.s32.totalorder %s60, %s63
      %p72 = scmp.eq.s32.totalorder %s15, 1
      %p73 = por %p71, %p72
      %p74 = scmp.ne.s32.totalorder %s63, %s64
      %p75 = scmp.eq.s32.totalorder %s15, 0
      %p76 = por %p74, %p75
      %p77 = scmp.ne.s32.totalorder %s63, %s64
      %p78 = scmp.eq.s32.totalorder %s16, 1
      %p79 = por %p77, %p78
      %p81 = scmp.ne.s32.totalorder %s64, %s80
      %p82 = scmp.eq.s32.totalorder %s16, 0
      %p83 = por %p81, %p82
      %p84 = scmp.le.s32.totalorder 1, %s10
      %p85 = scmp.lt.s32.totalorder %s10, 3
      %p86 = pnand %p84, %p85
      %p87 = pneg %p86
      // Predicated region
      $region9: #{tpu_custom_call.1} parent=5 // pred_check
        _
      $region10: #{tpu_custom_call.1} parent=5 // pred_check_branch
        %89 = sbr.rel (%p86) target = $region12
      $region11: #{tpu_custom_call.1} parent=5 // pred_region
        %s90 = ssub.s32 %s10, 1
      $region12: #{tpu_custom_call.1} parent=5 // pred_fallthru
        _
      %p91 = scmp.lt.s32.totalorder %s10, 2
      // Predicated region
      $region13: #{tpu_custom_call.1} parent=5 // pred_check
        %p92 = pneg %p91
      $region14: #{tpu_custom_call.1} parent=5 // pred_check_branch
        %94 = sbr.rel (%p92) target = $region16
      $region15: #{tpu_custom_call.1} parent=5 // pred_region
        // Predicated region
        $region17: #{tpu_custom_call.1} parent=15 // pred_check
          %p95 = pneg %p44
        $region18: #{tpu_custom_call.1} parent=15 // pred_check_branch
          %97 = sbr.rel (%p95) target = $region20
        $region19: #{tpu_custom_call.1} parent=15 // pred_region
          %s98 = sand.u32 %s34, 1
          %s99 = scalar_lea.sflag [#allocation5], %s98
          %s100 = sand.u32 %s34, 1
          %s101 = smul.addr %s100, 4
          %s102 = scalar_lea.vmem [#allocation4], %s101
          %s104 = ssub.s32 64, 64
          %105 = vsyncadd %s99, %s104
          %s106 = sadd.s32 %s18, %s17
          %s107 = smul.addr %s106, 64
          %s108 = scalar_lea.hbm %s0, %s107
          %s110 = sshll.u32 %s102, 4
          %s111 = int_to_ptr.vmem [resolvable:$true] %s110
          %113 = dma.hbm_to_vmem [thread:$0]  %s108, 64, %s111, %s99
        $region20: #{tpu_custom_call.1} parent=15 // pred_fallthru
          _
      $region16: #{tpu_custom_call.1} parent=5 // pred_fallthru
        _
      %p114 = scmp.le.s32.totalorder 1, %s10
      %p115 = scmp.lt.s32.totalorder %s10, 3
      %p116 = pnand %p114, %p115
      %p117 = pneg %p116
      // Predicated region
      $region21: #{tpu_custom_call.1} parent=5 // pred_check
        _
      $region22: #{tpu_custom_call.1} parent=5 // pred_check_branch
        %119 = sbr.rel (%p116) target = $region24
      $region23: #{tpu_custom_call.1} parent=5 // pred_region
        %s120 = ssub.s32 %s10, 1
        %s121 = sand.u32 %s37, 1
        %s122 = scalar_lea.sflag [#allocation5], %s121
        %s123 = sand.u32 %s37, 1
        %s124 = smul.addr %s123, 4
        %s125 = scalar_lea.vmem [#allocation4], %s124
        // Predicated region
        $region25: #{tpu_custom_call.1} parent=23 // pred_check
          %p126 = pneg %p50
        $region26: #{tpu_custom_call.1} parent=23 // pred_check_branch
          %128 = sbr.rel (%p126) target = $region28
        $region27: #{tpu_custom_call.1} parent=23 // pred_region
          %129 = dma.done %s122, 64
        $region28: #{tpu_custom_call.1} parent=23 // pred_fallthru
          _
        %s130 = sand.u32 %s37, 1
        %s131 = scalar_lea.sflag [#allocation5], %s130
        %s132 = sand.u32 %s37, 1
        %s133 = smul.addr %s132, 4
        %s134 = scalar_lea.vmem [#allocation4], %s133
        %p135 = pneg %p50
        %p136 = pneg %p47
        %p137 = pneg %p76
        %p138 = pneg %p73
        %p139 = scmp.lt.s32.totalorder %s19, 1
        %s140 = scalar_select %p139, %s19, 1
        %s141 = smul.addr %s140, 4
        %s142 = scalar_lea.vmem %s1, %s141
        %p143 = scmp.lt.s32.totalorder %s19, 1
        %s144 = scalar_select %p143, %s19, 1
        %s145 = smul.addr %s144, 4
        %s146 = scalar_lea.vmem %s1, %s145
        %p147 = scmp.eq.s32.totalorder %s20, 0
        // Predicated region
        $region29: #{tpu_custom_call.1} parent=23 // pred_check
          %p148 = pneg %p147
        $region30: #{tpu_custom_call.1} parent=23 // pred_check_branch
          %150 = sbr.rel (%p148) target = $region32
        $region31: #{tpu_custom_call.1} parent=23 // pred_region
          %vm151 = vcmask 24576
          %152 = vst.msk [vmem:[#allocation2] sm:$0x1] %vm151, 0.0
          %153 = vst.msk [vmem:[#allocation3] sm:$0x1] %vm151, -inf
        $region32: #{tpu_custom_call.1} parent=23 // pred_fallthru
          _
        %v154 = vld [vmem:[%s125] sm:$0xf]
        %v155 = vld [vmem:[#allocation2] sm:$0x1]
        %vm156 = vcmask 125952
        %v157 = vsel %vm156, %v154, 0.0
        %158 = vadd.xlane.f32.xlu0 %v157
        %v159 = vpop.xlane.xlu0 %158
        %v161 = vlaneseq
        %v162 = vshrl.u32 %v161, 7
        %v163 = vsub.s32 0, %v162
        %v164 = vrot.slane %v159, %v163
        %v165 = vlaneseq
        %v166 = vshrl.u32 %v165, 7
        %v167 = vsub.s32 1, %v166
        %v168 = vrot.slane %v159, %v167
        %v169 = vlaneseq
        %v170 = vshrl.u32 %v169, 7
        %v171 = vsub.s32 2, %v170
        %v172 = vrot.slane %v159, %v171
        %v173 = vlaneseq
        %v174 = vshrl.u32 %v173, 7
        %v175 = vsub.s32 3, %v174
        %v176 = vrot.slane %v159, %v175
        %v177 = vcombine.low %v164, %v168
        %v178 = vcombine.low %v172, %v176
        %v180 = vunpack.c.l.s4 1966171168
        %v181 = vunpack.c.0.s8 %v180
        %v182 = vlaneseq
        %v183 = vshrl.u32 %v182, 7
        %v184 = vsub.s32 %v181, %v183
        %v185 = vrot.slane %v177, %v184
        %v187 = vunpack.c.l.s4 1966171168
        %v188 = vunpack.c.0.s8 %v187
        %v189 = vlaneseq
        %v190 = vshrl.u32 %v189, 7
        %v191 = vsub.s32 %v188, %v190
        %v192 = vrot.slane %v178, %v191
        %v193 = vcombine.low %v185, %v192
        %v195 = vunpack.c.l.s4 1966171168
        %v196 = vunpack.c.0.s8 %v195
        %v197 = vlaneseq
        %v198 = vshrl.u32 %v197, 7
        %v199 = vsub.s32 %v196, %v198
        %v200 = vrot.slane %v193, %v199
        %201 = vset.pattern.permute.xlu0 0
        %202 = vperm.xlu0 %201, %v200
        %v203 = vpop.permute.xlu0 %202
        %v204 = vlaneseq
        %v205 = vand.u32 %v204, 127
        %v206 = vlaneseq
        %v207 = vshrl.u32 %v206, 7
        %v208 = vsub.s32 %v205, %v207
        %v209 = vrot.slane %v203, %v208
        %v211 = vunpack.c.l.s4 1966171168
        %v212 = vunpack.c.0.s8 %v211
        %v213 = vlaneseq
        %v214 = vshrl.u32 %v213, 7
        %v215 = vsub.s32 %v212, %v214
        %v216 = vrot.slane %v209, %v215
        %v218 = vunpack.c.l.s4 1966171168
        %v219 = vunpack.c.0.s8 %v218
        %v220 = vlaneseq
        %v221 = vshrl.u32 %v220, 7
        %v222 = vsub.s32 %v219, %v221
        %v223 = vrot.slane %v216, %v222
        %v225 = vadd.f32 %v155, %v223
        %vm226 = vcmask 24576
        %227 = vst.msk [vmem:[#allocation2] sm:$0x1] %vm226, %v225
        %v228 = vld [vmem:[#allocation3] sm:$0x1]
        %v229 = vsel %vm156, %v154, -inf
        %230 = vmax.xlane.f32.xlu0 %v229
        %v231 = vpop.xlane.xlu0 %230
        %v233 = vlaneseq
        %v234 = vshrl.u32 %v233, 7
        %v235 = vsub.s32 0, %v234
        %v236 = vrot.slane %v231, %v235
        %v237 = vlaneseq
        %v238 = vshrl.u32 %v237, 7
        %v239 = vsub.s32 1, %v238
        %v240 = vrot.slane %v231, %v239
        %v241 = vlaneseq
        %v242 = vshrl.u32 %v241, 7
        %v243 = vsub.s32 2, %v242
        %v244 = vrot.slane %v231, %v243
        %v245 = vlaneseq
        %v246 = vshrl.u32 %v245, 7
        %v247 = vsub.s32 3, %v246
        %v248 = vrot.slane %v231, %v247
        %v249 = vcombine.low %v236, %v240
        %v250 = vcombine.low %v244, %v248
        %v252 = vunpack.c.l.s4 1966171168
        %v253 = vunpack.c.0.s8 %v252
        %v254 = vlaneseq
        %v255 = vshrl.u32 %v254, 7
        %v256 = vsub.s32 %v253, %v255
        %v257 = vrot.slane %v249, %v256
        %v259 = vunpack.c.l.s4 1966171168
        %v260 = vunpack.c.0.s8 %v259
        %v261 = vlaneseq
        %v262 = vshrl.u32 %v261, 7
        %v263 = vsub.s32 %v260, %v262
        %v264 = vrot.slane %v250, %v263
        %v265 = vcombine.low %v257, %v264
        %v267 = vunpack.c.l.s4 1966171168
        %v268 = vunpack.c.0.s8 %v267
        %v269 = vlaneseq
        %v270 = vshrl.u32 %v269, 7
        %v271 = vsub.s32 %v268, %v270
        %v272 = vrot.slane %v265, %v271
        %273 = vset.pattern.permute.xlu0 0
        %274 = vperm.xlu0 %273, %v272
        %v275 = vpop.permute.xlu0 %274
        %v276 = vlaneseq
        %v277 = vshrl.u32 %v276, 7
        %v278 = vsub.s32 %v205, %v277
        %v279 = vrot.slane %v275, %v278
        %v281 = vunpack.c.l.s4 1966171168
        %v282 = vunpack.c.0.s8 %v281
        %v283 = vlaneseq
        %v284 = vshrl.u32 %v283, 7
        %v285 = vsub.s32 %v282, %v284
        %v286 = vrot.slane %v279, %v285
        %v288 = vunpack.c.l.s4 1966171168
        %v289 = vunpack.c.0.s8 %v288
        %v290 = vlaneseq
        %v291 = vshrl.u32 %v290, 7
        %v292 = vsub.s32 %v289, %v291
        %v293 = vrot.slane %v286, %v292
        %v295 = vmax.f32 %v228, %v293
        %296 = vst.msk [vmem:[#allocation3] sm:$0x1] %vm226, %v295
        // Predicated region
        $region33: #{tpu_custom_call.1} parent=23 // pred_check
          %p297 = pneg %p147
        $region34: #{tpu_custom_call.1} parent=23 // pred_check_branch
          %299 = sbr.rel (%p297) target = $region36
        $region35: #{tpu_custom_call.1} parent=23 // pred_region
          %v300 = vld [vmem:[#allocation2] sm:$0x1]
          %v301 = vld [vmem:[#allocation3] sm:$0x1]
          %v302 = vrcp.pop 16.0
          %v303 = vmul.f32 %v300, %v302
          %304 = vst.msk [vmem:[%s146] sm:$0x1] %vm226, %v303
          %305 = vst.msk [vmem:[%s146 + $0x1] sm:$0x1] %vm226, %v301
          %307 = vset.pattern.permute.xlu0 15
          %308 = vperm.xlu0 %307, %v154
          %v309 = vpop.permute.xlu0 %308
          %v310 = vlaneseq
          %v311 = vshrl.u32 %v310, 7
          %v312 = vsub.s32 %v205, %v311
          %v313 = vrot.slane %v309, %v312
          %315 = vst.msk [vmem:[%s146 + $0x2] sm:$0x1] %vm226, %v313
        $region36: #{tpu_custom_call.1} parent=23 // pred_fallthru
          _
        %p316 = scmp.lt.s32.totalorder %s19, 1
        %s317 = scalar_select %p316, %s19, 1
        %s318 = smul.addr %s317, 4
        %s319 = scalar_lea.vmem %s1, %s318
        // Predicated region
        $region37: #{tpu_custom_call.1} parent=23 // pred_check
          %p320 = pneg %p73
        $region38: #{tpu_custom_call.1} parent=23 // pred_check_branch
          %322 = sbr.rel (%p320) target = $region40
        $region39: #{tpu_custom_call.1} parent=23 // pred_region
          _
        $region40: #{tpu_custom_call.1} parent=23 // pred_fallthru
          _
      $region24: #{tpu_custom_call.1} parent=5 // pred_fallthru
        _
      %p323 = scmp.le.s32.totalorder 2, %s10
      // Predicated region
      $region41: #{tpu_custom_call.1} parent=5 // pred_check
        %p324 = pneg %p323
      $region42: #{tpu_custom_call.1} parent=5 // pred_check_branch
        %326 = sbr.rel (%p324) target = $region44
      $region43: #{tpu_custom_call.1} parent=5 // pred_region
        %s327 = ssub.s32 %s10, 2
        // Predicated region
        $region45: #{tpu_custom_call.1} parent=43 // pred_check
          %p328 = pneg %p79
        $region46: #{tpu_custom_call.1} parent=43 // pred_check_branch
          %330 = sbr.rel (%p328) target = $region48
        $region47: #{tpu_custom_call.1} parent=43 // pred_region
          %p331 = scmp.lt.s32.totalorder %s21, 1
          %s332 = scalar_select %p331, %s21, 1
          %s333 = smul.addr %s332, 4
          %s334 = scalar_lea.vmem %s1, %s333
        $region48: #{tpu_custom_call.1} parent=43 // pred_fallthru
          _
      $region44: #{tpu_custom_call.1} parent=5 // pred_fallthru
        _
    $region6: #{tpu_custom_call.1} parent=1 // loop_footer
      %s14 = sadd.s32 1, %s10
    $region7: #{tpu_custom_call.1} parent=1 // loop_footer_branch
      %9 = sbr.rel target = $region3
    $region8: #{tpu_custom_call.1} parent=1 // loop_exit
      _
    %335 = vsyncpa [#allocation5], 1
    %s336 = scalar_lea.sflag [#allocation5], 1
    %337 = vsyncpa %s336, 1

</llo_original>
